<compile_context>
chip_gen: v7x
topology: tpu7x:2x2x1
jax: 0.10.0
libtpu: 0.0.40
codegen_flags: <defaults>
</compile_context>

<pallas_src>
import math

import numpy as np
import jax
import jax.numpy as jnp
from jax.experimental import pallas as pl
from jax.experimental.pallas import tpu as pltpu


def _build_pool_spec(pooling_counts, N):
    """Replicates SparseMaxPool.__init__ bookkeeping: (kernel_size, offset) per
    pooler, and the static boolean mask2d buffer."""
    mask2d = np.zeros((N, N), dtype=bool)
    mask2d[np.arange(N), np.arange(N)] = True
    specs = []  # list of (kernel_size, offset), zip(poolers, maskij) order
    stride, offset = 1, 0
    for gi, c in enumerate(pooling_counts):
        ksz = 2 if gi == 0 else 2 * gi + 1  # MaxPool1d(2,1) then MaxPool1d(2i+1,1)
        for _ in range(c):
            offset += stride
            mask2d[np.arange(0, N - offset), np.arange(offset, N)] = True
            specs.append((ksz, offset))
        stride *= 2
    return specs, mask2d


def _pick_d_tile(D, N, dtype):
    """Largest divisor of D (multiple of 8, or D itself) whose output block
    fits comfortably in VMEM, with v7x's smaller VMEM accounted for."""
    vmem_cap = None
    try:
        vmem_cap = int(pltpu.get_tpu_info().vmem_capacity_bytes)
    except Exception:
        vmem_cap = None
    if not vmem_cap:
        vmem_cap = 64 * 1024 * 1024  # conservative (v7x-sized) fallback

    itemsize = np.dtype(dtype).itemsize
    budget = vmem_cap // 4                      # headroom for double-buffering etc.
    per_d = 6 * N * N * itemsize                # ~2x out block + in-flight temporaries
    cap = max(1, budget // per_d)

    cands = [t for t in range(1, D + 1)
             if D % t == 0 and (t % 8 == 0 or t == D)]
    fits = [t for t in cands if t <= cap]
    tD = max(fits) if fits else min(cands)
    return tD, vmem_cap


def _make_kernel(N, n_steps, dtype):
    """Kernel body: tile x along the flat (i*N + j) axis, run a segmented
    (per map-row, starting at the diagonal) prefix max, mask unwritten cells."""
    NN = N * N
    if jnp.issubdtype(jnp.dtype(dtype), jnp.floating):
        neg_const = float("-inf")
    else:
        neg_const = int(jnp.iinfo(dtype).min)

    def kernel(x_ref, aux_ref, o_ref):
        x = x_ref[0]                      # (tD, N)
        delta = aux_ref[0:1, :]           # (1, NN) int32 : j - i per flat position
        written = aux_ref[1:2, :]         # (1, NN) int32 : mask2d flattened
        neg = jnp.asarray(neg_const, dtype=x.dtype)

        # x tiled along the flat axis: value x[d, j] sits at flat position i*N+j.
        # Built by doubling so only ~log2(N) concats are needed.
        t = x
        while t.shape[1] < NN:
            take = min(t.shape[1], NN - t.shape[1])
            t = jnp.concatenate([t, t[:, :take]], axis=1)
        o_ref[0] = t

        # Segmented prefix max (Hillis-Steele doubling).  The segment for map
        # row i starts at its diagonal, enforced by the static `delta >= s`
        # mask; positions below the diagonal never pull shifted values and are
        # zeroed at the end.  Shifts use an unambiguous slice+concat (the pad
        # value is never selected); pltpu.roll would also work here.
        s = 1
        for _ in range(n_steps):
            acc = o_ref[0]
            pad = jnp.full((acc.shape[0], s), neg, dtype=acc.dtype)
            shifted = jnp.concatenate([pad, acc[:, :NN - s]], axis=1)
            o_ref[0] = jnp.maximum(acc, jnp.where(delta >= s, shifted, neg))
            s *= 2

        # Zero everything that the PyTorch module never writes.
        o_ref[0] = jnp.where(written != 0, o_ref[0], jnp.zeros((), x.dtype))

    return kernel


def sparse_max_pool(x, pooling_counts):
    """Pallas implementation of SparseMaxPool.forward. Returns (map2d, mask2d)."""
    B, D, N = x.shape
    specs, mask2d_np = _build_pool_spec(pooling_counts, N)

    # The prefix-max reformulation relies on cumulative reduction == cumulative
    # offset, which is exactly the condition under which the PyTorch assignment
    # is shape-compatible at all.  Verify it (torch would raise otherwise).
    red = 0
    for ksz, off in specs:
        red += ksz - 1
        if red != off:
            raise ValueError(
                "SparseMaxPool configuration is inconsistent: pooled length "
                "would not match the diagonal being written (torch would raise "
                "a shape error for this pooling_counts / N combination).")

    NN = N * N
    ii = np.arange(N)[:, None]
    jj = np.arange(N)[None, :]
    delta_flat = (jj - ii).reshape(-1).astype(np.int32)
    written_flat = mask2d_np.reshape(-1).astype(np.int32)
    aux = jnp.asarray(np.stack([delta_flat, written_flat], axis=0))  # (2, NN)

    tD, vmem_cap = _pick_d_tile(D, N, x.dtype)
    n_steps = int(math.ceil(math.log2(N))) if N > 1 else 0
    kernel = _make_kernel(N, n_steps, x.dtype)

    grid = (B, D // tD)
    out_flat = pl.pallas_call(
        kernel,
        out_shape=jax.ShapeDtypeStruct((B, D, NN), x.dtype),
        grid_spec=pltpu.PrefetchScalarGridSpec(
            num_scalar_prefetch=0,
            grid=grid,
            in_specs=[
                pl.BlockSpec((1, tD, N), lambda b, d: (b, d, 0)),
                pl.BlockSpec((2, NN), lambda b, d: (0, 0)),
            ],
            out_specs=pl.BlockSpec((1, tD, NN), lambda b, d: (b, d, 0)),
        ),
        compiler_params=pltpu.CompilerParams(
            dimension_semantics=("parallel", "parallel"),
            vmem_limit_bytes=int(min(vmem_cap * 3 // 4, 112 * 1024 * 1024)),
        ),
    )(x, aux)

    # Flat p = i*N + j is the same memory order as (..., N, N) row-major.
    map2d = out_flat.reshape(B, D, N, N)
    return map2d, jnp.asarray(mask2d_np)


def ref_forward(x_np, pooling_counts):
    """Pure-numpy reference mirroring the PyTorch forward (chained pooling)."""
    B, D, N = x_np.shape
    specs, mask2d = _build_pool_spec(pooling_counts, N)
    map2d = np.zeros((B, D, N, N), dtype=x_np.dtype)
    map2d[:, :, np.arange(N), np.arange(N)] = x_np
    cur = x_np
    for ksz, off in specs:
        L = cur.shape[-1]
        new_len = L - ksz + 1
        stacked = np.stack([cur[..., s:s + new_len] for s in range(ksz)],
                           axis=-1)
        cur = stacked.max(axis=-1)
        map2d[:, :, np.arange(0, N - off), np.arange(off, N)] = cur
    return map2d, mask2d


if __name__ == "__main__":
    B, D, N = 2, 4, 16
    pooling_counts = [7, 4]  # offsets 1..7 (kernel 2), then 9,11,13,15 (kernel 3)

    key = jax.random.PRNGKey(0)
    x = jax.random.normal(key, (B, D, N), dtype=jnp.float32)

    map2d, mask2d = sparse_max_pool(x, pooling_counts)
    map2d = jax.block_until_ready(map2d)
    mask2d = jax.block_until_ready(mask2d)

    # Correctness check against a pure-numpy reference of the PyTorch forward.
    ref_map2d, ref_mask2d = ref_forward(np.asarray(x), pooling_counts)
    np.testing.assert_allclose(np.asarray(map2d), ref_map2d, rtol=1e-6, atol=1e-6)
    np.testing.assert_array_equal(np.asarray(mask2d), ref_mask2d)

    print("KERNEL_OK")
</pallas_src>

<mosaic_0001>
module attributes {stable_mosaic.version = 11 : i64} {
  func.func @kernel(%arg0: i32, %arg1: i32, %arg2: memref<1x4x16xf32, #tpu.memory_space<vmem>>, %arg3: memref<2x256xi32, #tpu.memory_space<vmem>>, %arg4: memref<1x4x256xf32, #tpu.memory_space<vmem>>) attributes {dimension_semantics = [#tpu.dimension_semantics<parallel>, #tpu.dimension_semantics<parallel>], iteration_bounds = array<i64: 2, 1>, scalar_prefetch = 0 : i64, scratch_operands = 0 : i64, tpu.core_type = #tpu.core_type<tc>, window_params = [{transform_indices = @transform_0, window_bounds = array<i64: 1, 4, 16>}, {pipeline_mode = #tpu.pipeline_mode<synchronous>, transform_indices = @transform_1, window_bounds = array<i64: 2, 256>}, {transform_indices = @transform_2, window_bounds = array<i64: 1, 4, 256>}]} {
    %c0 = arith.constant 0 : index
    %c0_0 = arith.constant 0 : index
    %c0_1 = arith.constant 0 : index
    %0 = vector.load %arg2[%c0, %c0_0, %c0_1] : memref<1x4x16xf32, #tpu.memory_space<vmem>>, vector<1x4x16xf32>
    %1 = vector.shape_cast %0 : vector<1x4x16xf32> to vector<4x16xf32>
    %c0_2 = arith.constant 0 : index
    %c0_3 = arith.constant 0 : index
    %2 = vector.load %arg3[%c0_2, %c0_3] : memref<2x256xi32, #tpu.memory_space<vmem>>, vector<1x256xi32>
    %c1 = arith.constant 1 : index
    %c0_4 = arith.constant 0 : index
    %3 = vector.load %arg3[%c1, %c0_4] : memref<2x256xi32, #tpu.memory_space<vmem>>, vector<1x256xi32>
    %4 = tpu.concatenate %1, %1 in 1 : vector<4x16xf32>, vector<4x16xf32> -> vector<4x32xf32>
    %5 = tpu.concatenate %4, %4 in 1 : vector<4x32xf32>, vector<4x32xf32> -> vector<4x64xf32>
    %6 = tpu.concatenate %5, %5 in 1 : vector<4x64xf32>, vector<4x64xf32> -> vector<4x128xf32>
    %7 = tpu.concatenate %6, %6 in 1 : vector<4x128xf32>, vector<4x128xf32> -> vector<4x256xf32>
    %c0_5 = arith.constant 0 : index
    %c0_6 = arith.constant 0 : index
    %c0_7 = arith.constant 0 : index
    %8 = vector.load %arg4[%c0_5, %c0_6, %c0_7] : memref<1x4x256xf32, #tpu.memory_space<vmem>>, vector<1x4x256xf32>
    %9 = vector.shape_cast %8 : vector<1x4x256xf32> to vector<4x256xf32>
    %10 = vector.shape_cast %7 : vector<4x256xf32> to vector<1x4x256xf32>
    tpu.vector_store %arg4[%c0_5, %c0_6, %c0_7], %10 {strides = array<i32>} : memref<1x4x256xf32, #tpu.memory_space<vmem>>, vector<1x4x256xf32>,
    %c0_8 = arith.constant 0 : index
    %c0_9 = arith.constant 0 : index
    %c0_10 = arith.constant 0 : index
    %11 = vector.load %arg4[%c0_8, %c0_9, %c0_10] : memref<1x4x256xf32, #tpu.memory_space<vmem>>, vector<1x4x256xf32>
    %12 = vector.shape_cast %11 : vector<1x4x256xf32> to vector<4x256xf32>
    %cst = arith.constant 0xFF800000 : f32
    %13 = vector.broadcast %cst : f32 to vector<4x1xf32>
    %14 = vector.extract_strided_slice %12 {offsets = [0, 0], sizes = [4, 255], strides = [1, 1]} : vector<4x256xf32> to vector<4x255xf32>
    %15 = tpu.concatenate %13, %14 in 1 : vector<4x1xf32>, vector<4x255xf32> -> vector<4x256xf32>
    %c1_i32 = arith.constant 1 : i32
    %16 = vector.broadcast %c1_i32 : i32 to vector<1x256xi32>
    %17 = arith.cmpi sge, %2, %16 : vector<1x256xi32>
    %cst_11 = arith.constant 0xFF800000 : f32
    %18 = vector.shape_cast %17 : vector<1x256xi1> to vector<1x256xi1>
    %19 = vector.broadcast %18 : vector<1x256xi1> to vector<4x256xi1>
    %20 = vector.broadcast %cst_11 : f32 to vector<4x256xf32>
    %21 = arith.select %19, %15, %20 : vector<4x256xi1>, vector<4x256xf32>
    %22 = arith.maximumf %12, %21 : vector<4x256xf32>
    %c0_12 = arith.constant 0 : index
    %c0_13 = arith.constant 0 : index
    %c0_14 = arith.constant 0 : index
    %23 = vector.load %arg4[%c0_12, %c0_13, %c0_14] : memref<1x4x256xf32, #tpu.memory_space<vmem>>, vector<1x4x256xf32>
    %24 = vector.shape_cast %23 : vector<1x4x256xf32> to vector<4x256xf32>
    %25 = vector.shape_cast %22 : vector<4x256xf32> to vector<1x4x256xf32>
    tpu.vector_store %arg4[%c0_12, %c0_13, %c0_14], %25 {strides = array<i32>} : memref<1x4x256xf32, #tpu.memory_space<vmem>>, vector<1x4x256xf32>,
    %c0_15 = arith.constant 0 : index
    %c0_16 = arith.constant 0 : index
    %c0_17 = arith.constant 0 : index
    %26 = vector.load %arg4[%c0_15, %c0_16, %c0_17] : memref<1x4x256xf32, #tpu.memory_space<vmem>>, vector<1x4x256xf32>
    %27 = vector.shape_cast %26 : vector<1x4x256xf32> to vector<4x256xf32>
    %cst_18 = arith.constant 0xFF800000 : f32
    %28 = vector.broadcast %cst_18 : f32 to vector<4x2xf32>
    %29 = vector.extract_strided_slice %27 {offsets = [0, 0], sizes = [4, 254], strides = [1, 1]} : vector<4x256xf32> to vector<4x254xf32>
    %30 = tpu.concatenate %28, %29 in 1 : vector<4x2xf32>, vector<4x254xf32> -> vector<4x256xf32>
    %c2_i32 = arith.constant 2 : i32
    %31 = vector.broadcast %c2_i32 : i32 to vector<1x256xi32>
    %32 = arith.cmpi sge, %2, %31 : vector<1x256xi32>
    %cst_19 = arith.constant 0xFF800000 : f32
    %33 = vector.shape_cast %32 : vector<1x256xi1> to vector<1x256xi1>
    %34 = vector.broadcast %33 : vector<1x256xi1> to vector<4x256xi1>
    %35 = vector.broadcast %cst_19 : f32 to vector<4x256xf32>
    %36 = arith.select %34, %30, %35 : vector<4x256xi1>, vector<4x256xf32>
    %37 = arith.maximumf %27, %36 : vector<4x256xf32>
    %c0_20 = arith.constant 0 : index
    %c0_21 = arith.constant 0 : index
    %c0_22 = arith.constant 0 : index
    %38 = vector.load %arg4[%c0_20, %c0_21, %c0_22] : memref<1x4x256xf32, #tpu.memory_space<vmem>>, vector<1x4x256xf32>
    %39 = vector.shape_cast %38 : vector<1x4x256xf32> to vector<4x256xf32>
    %40 = vector.shape_cast %37 : vector<4x256xf32> to vector<1x4x256xf32>
    tpu.vector_store %arg4[%c0_20, %c0_21, %c0_22], %40 {strides = array<i32>} : memref<1x4x256xf32, #tpu.memory_space<vmem>>, vector<1x4x256xf32>,
    %c0_23 = arith.constant 0 : index
    %c0_24 = arith.constant 0 : index
    %c0_25 = arith.constant 0 : index
    %41 = vector.load %arg4[%c0_23, %c0_24, %c0_25] : memref<1x4x256xf32, #tpu.memory_space<vmem>>, vector<1x4x256xf32>
    %42 = vector.shape_cast %41 : vector<1x4x256xf32> to vector<4x256xf32>
    %cst_26 = arith.constant 0xFF800000 : f32
    %43 = vector.broadcast %cst_26 : f32 to vector<4x4xf32>
    %44 = vector.extract_strided_slice %42 {offsets = [0, 0], sizes = [4, 252], strides = [1, 1]} : vector<4x256xf32> to vector<4x252xf32>
    %45 = tpu.concatenate %43, %44 in 1 : vector<4x4xf32>, vector<4x252xf32> -> vector<4x256xf32>
    %c4_i32 = arith.constant 4 : i32
    %46 = vector.broadcast %c4_i32 : i32 to vector<1x256xi32>
    %47 = arith.cmpi sge, %2, %46 : vector<1x256xi32>
    %cst_27 = arith.constant 0xFF800000 : f32
    %48 = vector.shape_cast %47 : vector<1x256xi1> to vector<1x256xi1>
    %49 = vector.broadcast %48 : vector<1x256xi1> to vector<4x256xi1>
    %50 = vector.broadcast %cst_27 : f32 to vector<4x256xf32>
    %51 = arith.select %49, %45, %50 : vector<4x256xi1>, vector<4x256xf32>
    %52 = arith.maximumf %42, %51 : vector<4x256xf32>
    %c0_28 = arith.constant 0 : index
    %c0_29 = arith.constant 0 : index
    %c0_30 = arith.constant 0 : index
    %53 = vector.load %arg4[%c0_28, %c0_29, %c0_30] : memref<1x4x256xf32, #tpu.memory_space<vmem>>, vector<1x4x256xf32>
    %54 = vector.shape_cast %53 : vector<1x4x256xf32> to vector<4x256xf32>
    %55 = vector.shape_cast %52 : vector<4x256xf32> to vector<1x4x256xf32>
    tpu.vector_store %arg4[%c0_28, %c0_29, %c0_30], %55 {strides = array<i32>} : memref<1x4x256xf32, #tpu.memory_space<vmem>>, vector<1x4x256xf32>,
    %c0_31 = arith.constant 0 : index
    %c0_32 = arith.constant 0 : index
    %c0_33 = arith.constant 0 : index
    %56 = vector.load %arg4[%c0_31, %c0_32, %c0_33] : memref<1x4x256xf32, #tpu.memory_space<vmem>>, vector<1x4x256xf32>
    %57 = vector.shape_cast %56 : vector<1x4x256xf32> to vector<4x256xf32>
    %cst_34 = arith.constant 0xFF800000 : f32
    %58 = vector.broadcast %cst_34 : f32 to vector<4x8xf32>
    %59 = vector.extract_strided_slice %57 {offsets = [0, 0], sizes = [4, 248], strides = [1, 1]} : vector<4x256xf32> to vector<4x248xf32>
    %60 = tpu.concatenate %58, %59 in 1 : vector<4x8xf32>, vector<4x248xf32> -> vector<4x256xf32>
    %c8_i32 = arith.constant 8 : i32
    %61 = vector.broadcast %c8_i32 : i32 to vector<1x256xi32>
    %62 = arith.cmpi sge, %2, %61 : vector<1x256xi32>
    %cst_35 = arith.constant 0xFF800000 : f32
    %63 = vector.shape_cast %62 : vector<1x256xi1> to vector<1x256xi1>
    %64 = vector.broadcast %63 : vector<1x256xi1> to vector<4x256xi1>
    %65 = vector.broadcast %cst_35 : f32 to vector<4x256xf32>
    %66 = arith.select %64, %60, %65 : vector<4x256xi1>, vector<4x256xf32>
    %67 = arith.maximumf %57, %66 : vector<4x256xf32>
    %c0_36 = arith.constant 0 : index
    %c0_37 = arith.constant 0 : index
    %c0_38 = arith.constant 0 : index
    %68 = vector.load %arg4[%c0_36, %c0_37, %c0_38] : memref<1x4x256xf32, #tpu.memory_space<vmem>>, vector<1x4x256xf32>
    %69 = vector.shape_cast %68 : vector<1x4x256xf32> to vector<4x256xf32>
    %70 = vector.shape_cast %67 : vector<4x256xf32> to vector<1x4x256xf32>
    tpu.vector_store %arg4[%c0_36, %c0_37, %c0_38], %70 {strides = array<i32>} : memref<1x4x256xf32, #tpu.memory_space<vmem>>, vector<1x4x256xf32>,
    %c0_i32 = arith.constant 0 : i32
    %71 = vector.broadcast %c0_i32 : i32 to vector<1x256xi32>
    %72 = arith.cmpi ne, %3, %71 : vector<1x256xi32>
    %c0_39 = arith.constant 0 : index
    %c0_40 = arith.constant 0 : index
    %c0_41 = arith.constant 0 : index
    %73 = vector.load %arg4[%c0_39, %c0_40, %c0_41] : memref<1x4x256xf32, #tpu.memory_space<vmem>>, vector<1x4x256xf32>
    %74 = vector.shape_cast %73 : vector<1x4x256xf32> to vector<4x256xf32>
    %cst_42 = arith.constant 0.000000e+00 : f32
    %75 = vector.shape_cast %72 : vector<1x256xi1> to vector<1x256xi1>
    %76 = vector.broadcast %75 : vector<1x256xi1> to vector<4x256xi1>
    %77 = vector.broadcast %cst_42 : f32 to vector<4x256xf32>
    %78 = arith.select %76, %74, %77 : vector<4x256xi1>, vector<4x256xf32>
    %c0_43 = arith.constant 0 : index
    %c0_44 = arith.constant 0 : index
    %c0_45 = arith.constant 0 : index
    %79 = vector.load %arg4[%c0_43, %c0_44, %c0_45] : memref<1x4x256xf32, #tpu.memory_space<vmem>>, vector<1x4x256xf32>
    %80 = vector.shape_cast %79 : vector<1x4x256xf32> to vector<4x256xf32>
    %81 = vector.shape_cast %78 : vector<4x256xf32> to vector<1x4x256xf32>
    tpu.vector_store %arg4[%c0_43, %c0_44, %c0_45], %81 {strides = array<i32>} : memref<1x4x256xf32, #tpu.memory_space<vmem>>, vector<1x4x256xf32>,
    return
  }
  func.func @transform_0(%arg0: i32, %arg1: i32) -> (i32, i32, i32) {
    %c0_i32 = arith.constant 0 : i32
    %c0_i32_0 = arith.constant 0 : i32
    return %arg0, %arg1, %c0_i32 : i32, i32, i32
  }
  func.func @transform_1(%arg0: i32, %arg1: i32) -> (i32, i32) {
    %c0_i32 = arith.constant 0 : i32
    %c0_i32_0 = arith.constant 0 : i32
    %c0_i32_1 = arith.constant 0 : i32
    return %c0_i32, %c0_i32_0 : i32, i32
  }
  func.func @transform_2(%arg0: i32, %arg1: i32) -> (i32, i32, i32) {
    %c0_i32 = arith.constant 0 : i32
    %c0_i32_0 = arith.constant 0 : i32
    return %arg0, %arg1, %c0_i32 : i32, i32, i32
  }
}

</mosaic_0001>

<llo_original>
// kernel: tpu_custom_call.1
$region0: #{tpu_custom_call.1}
  #allocation0 [shape = 'u32[]', space=smem, size = 0x4, offset = 0x4, fixed_abs, tag = 'smem constant byte address 0x4 - core index']
  #allocation1 [shape = 'u32[144,128]{1,0:T(1,128)}', space=vmem, size = 0x12000, scoped, tag = 'internal scratch']
  %s0 = inlined_call_operand.hbm [shape: f32[2,4,16], index: 0, kind: input, shape index: {}]
  %s1 = inlined_call_operand.hbm [shape: s32[2,256], index: 1, kind: input, shape index: {}]
  %s2 = inlined_call_operand.hbm [shape: f32[2,4,256], index: 2, kind: output, shape index: {}]
  %s3 = sld [smem:[#allocation0]]
  $region49: #{tpu_custom_call.1} parent=0
    _
  %s5 = ssub.s32 1, %s3
  %s6 = scalar_select 0, %s5, %s3
  $region1: #{tpu_custom_call.1} parent=0
    #allocation2 [shape = 'u8[4096]{0}', space=vmem, size = 0x1000, scoped, tag = 'input window, operand 0']
    #allocation3 [shape = 's32[2]{0}', space=sflag, size = 0x8, scoped, tag = 'scoped memory for tpu_custom_call.1']
    #allocation4 [shape = 's32[2]{0}', space=sflag, size = 0x8, scoped, tag = 'scoped memory for tpu_custom_call.1']
    #allocation5 [shape = 'u8[2048]{0}', space=vmem, size = 0x800, scoped, tag = 'input window, operand 1, single buffered']
    #allocation6 [shape = 's32[1]{0}', space=sflag, size = 0x4, scoped, tag = 'scoped memory for tpu_custom_call.1']
    #allocation7 [shape = 'u8[8192]{0}', space=vmem, size = 0x2000, scoped, tag = 'output window, operand 0']
    %7 = vsyncpa [#allocation3], 0
    %s8 = scalar_lea.sflag [#allocation3], 1
    %9 = vsyncpa %s8, 0
    %10 = vsyncpa [#allocation6], 0
    %11 = vsyncpa [#allocation4], 0
    %s12 = scalar_lea.sflag [#allocation4], 1
    %13 = vsyncpa %s12, 0
    loop: start=0, step=1, limit=4
    $region2: #{tpu_custom_call.1} parent=1 // loop_pre_header
      _
    $region3: #{tpu_custom_call.1} parent=1 // loop_header
      %s15 = sphi 0, %s19
      %p16 = scmp.ge.s32.totalorder %s15, 4
      %s22 = sphi 0, %s34
      %s23 = sphi 0, %s30
      %s24 = sphi 0, %s22
      %s25 = sphi 0, %s23
      %s26 = sphi 0, %s24
      %s27 = sphi 0, %s25
      %s39 = sphi 0, %s41
      %s42 = sphi 0, %s39
      %s43 = sphi 0, %s42
      %s59 = sphi 0, %s43
      %s63 = sphi 0, %s63
      %s65 = sphi 0, %s63
      %s66 = sphi 0, %s65
      %s80 = sphi 0, %s66
      %s88 = sphi 0, %s90
      %s91 = sphi 0, %s88
      %s92 = sphi 0, %s91
      %s108 = sphi 0, %s92
    $region4: #{tpu_custom_call.1} parent=1 // loop_header_branch
      %18 = sbr.rel (%p16) target = $region8
    $region5: #{tpu_custom_call.1} parent=1 // loop_body
      %s20 = ssub.s32 %s15, 1
      %s21 = ssub.s32 %s15, 2
      %s28 = sadd.s32 1, %s23
      %p29 = scmp.ge.s32.totalorder %s28, 1
      %s30 = scalar_select %p29, 0, %s28
      %s31 = sadd.s32 1, %s22
      %s32 = scalar_select %p29, %s31, %s22
      %p33 = scmp.ge.s32.totalorder %s32, 2
      %s34 = scalar_select %p33, 0, %s32
      %s35 = ssub.s32 %s22, %s34
      %s36 = ssub.s32 %s23, %s30
      %s37 = sor.u32 %s35, %s36
      %p38 = scmp.eq.s32.totalorder %s37, 0
      %s40 = sadd.s32 %s39, 1
      %s41 = scalar_select %p38, %s39, %s40
      %p44 = pneg %p38
      %p45 = scmp.eq.s32.totalorder %s15, 1
      %p46 = por %p44, %p45
      %p47 = scmp.ne.s32.totalorder %s39, %s42
      %p48 = scmp.eq.s32.totalorder %s15, 0
      %p49 = por %p47, %p48
      %p50 = scmp.ne.s32.totalorder %s39, %s42
      %p51 = scmp.eq.s32.totalorder %s20, 1
      %p52 = por %p50, %p51
      %p53 = scmp.ne.s32.totalorder %s42, %s43
      %p54 = scmp.eq.s32.totalorder %s20, 0
      %p55 = por %p53, %p54
      %p56 = scmp.ne.s32.totalorder %s42, %s43
      %p57 = scmp.eq.s32.totalorder %s21, 1
      %p58 = por %p56, %p57
      %p60 = scmp.ne.s32.totalorder %s43, %s59
      %p61 = scmp.eq.s32.totalorder %s21, 0
      %p62 = por %p60, %p61
      %s64 = sadd.s32 %s63, 1
      %p67 = scmp.eq.s32.totalorder %s15, 1
      %p68 = scmp.ne.s32.totalorder %s63, %s65
      %p69 = scmp.eq.s32.totalorder %s15, 0
      %p70 = por %p68, %p69
      %p71 = scmp.ne.s32.totalorder %s63, %s65
      %p72 = scmp.eq.s32.totalorder %s20, 1
      %p73 = por %p71, %p72
      %p74 = scmp.ne.s32.totalorder %s65, %s66
      %p75 = scmp.eq.s32.totalorder %s20, 0
      %p76 = por %p74, %p75
      %p77 = scmp.ne.s32.totalorder %s65, %s66
      %p78 = scmp.eq.s32.totalorder %s21, 1
      %p79 = por %p77, %p78
      %p81 = scmp.ne.s32.totalorder %s66, %s80
      %p82 = scmp.eq.s32.totalorder %s21, 0
      %p83 = por %p81, %p82
      %s84 = ssub.s32 %s22, %s34
      %s85 = ssub.s32 %s23, %s30
      %s86 = sor.u32 %s84, %s85
      %p87 = scmp.eq.s32.totalorder %s86, 0
      %s89 = sadd.s32 %s88, 1
      %s90 = scalar_select %p87, %s88, %s89
      %p93 = pneg %p87
      %p94 = scmp.eq.s32.totalorder %s15, 1
      %p95 = por %p93, %p94
      %p96 = scmp.ne.s32.totalorder %s88, %s91
      %p97 = scmp.eq.s32.totalorder %s15, 0
      %p98 = por %p96, %p97
      %p99 = scmp.ne.s32.totalorder %s88, %s91
      %p100 = scmp.eq.s32.totalorder %s20, 1
      %p101 = por %p99, %p100
      %p102 = scmp.ne.s32.totalorder %s91, %s92
      %p103 = scmp.eq.s32.totalorder %s20, 0
      %p104 = por %p102, %p103
      %p105 = scmp.ne.s32.totalorder %s91, %s92
      %p106 = scmp.eq.s32.totalorder %s21, 1
      %p107 = por %p105, %p106
      %p109 = scmp.ne.s32.totalorder %s92, %s108
      %p110 = scmp.eq.s32.totalorder %s21, 0
      %p111 = por %p109, %p110
      %p112 = scmp.le.s32.totalorder 1, %s15
      %p113 = scmp.lt.s32.totalorder %s15, 3
      %p114 = pnand %p112, %p113
      %p115 = pneg %p114
      // Predicated region
      $region9: #{tpu_custom_call.1} parent=5 // pred_check
        _
      $region10: #{tpu_custom_call.1} parent=5 // pred_check_branch
        %117 = sbr.rel (%p114) target = $region12
      $region11: #{tpu_custom_call.1} parent=5 // pred_region
        %s118 = ssub.s32 %s15, 1
        // Predicated region
        $region13: #{tpu_custom_call.1} parent=11 // pred_check
          %p119 = pneg %p76
        $region14: #{tpu_custom_call.1} parent=11 // pred_check_branch
          %121 = sbr.rel (%p119) target = $region16
        $region15: #{tpu_custom_call.1} parent=11 // pred_region
          %s123 = ssub.s32 64, 64
          %124 = vsyncadd [#allocation6], %s123
          %s126 = sshll.u32 [#allocation5], 4
          %s127 = int_to_ptr.vmem [resolvable:$true] %s126
          %129 = dma.hbm_to_vmem [thread:$0]  %s1, 64, %s127, [#allocation6]
        $region16: #{tpu_custom_call.1} parent=11 // pred_fallthru
          _
      $region12: #{tpu_custom_call.1} parent=5 // pred_fallthru
        _
      %p130 = scmp.lt.s32.totalorder %s15, 2
      // Predicated region
      $region17: #{tpu_custom_call.1} parent=5 // pred_check
        %p131 = pneg %p130
      $region18: #{tpu_custom_call.1} parent=5 // pred_check_branch
        %133 = sbr.rel (%p131) target = $region20
      $region19: #{tpu_custom_call.1} parent=5 // pred_region
        // Predicated region
        $region21: #{tpu_custom_call.1} parent=19 // pred_check
          %p134 = pneg %p49
        $region22: #{tpu_custom_call.1} parent=19 // pred_check_branch
          %136 = sbr.rel (%p134) target = $region24
        $region23: #{tpu_custom_call.1} parent=19 // pred_region
          %s137 = sand.u32 %s39, 1
          %s138 = scalar_lea.sflag [#allocation3], %s137
          %s139 = sand.u32 %s39, 1
          %s140 = smul.addr %s139, 4
          %s141 = scalar_lea.vmem [#allocation2], %s140
          %s143 = ssub.s32 64, 64
          %144 = vsyncadd %s138, %s143
          %s145 = sadd.s32 %s23, %s22
          %s146 = smul.addr %s145, 64
          %s147 = scalar_lea.hbm %s0, %s146
          %s149 = sshll.u32 %s141, 4
          %s150 = int_to_ptr.vmem [resolvable:$true] %s149
          %152 = dma.hbm_to_vmem [thread:$0]  %s147, 64, %s150, %s138
        $region24: #{tpu_custom_call.1} parent=19 // pred_fallthru
          _
      $region20: #{tpu_custom_call.1} parent=5 // pred_fallthru
        _
      %p153 = scmp.le.s32.totalorder 1, %s15
      %p154 = scmp.lt.s32.totalorder %s15, 3
      %p155 = pnand %p153, %p154
      %p156 = pneg %p155
      // Predicated region
      $region25: #{tpu_custom_call.1} parent=5 // pred_check
        _
      $region26: #{tpu_custom_call.1} parent=5 // pred_check_branch
        %158 = sbr.rel (%p155) target = $region28
      $region27: #{tpu_custom_call.1} parent=5 // pred_region
        %s159 = ssub.s32 %s15, 1
        %s160 = sand.u32 %s42, 1
        %s161 = scalar_lea.sflag [#allocation3], %s160
        %s162 = sand.u32 %s42, 1
        %s163 = smul.addr %s162, 4
        %s164 = scalar_lea.vmem [#allocation2], %s163
        // Predicated region
        $region29: #{tpu_custom_call.1} parent=27 // pred_check
          %p165 = pneg %p55
        $region30: #{tpu_custom_call.1} parent=27 // pred_check_branch
          %167 = sbr.rel (%p165) target = $region32
        $region31: #{tpu_custom_call.1} parent=27 // pred_region
          %168 = dma.done %s161, 64
        $region32: #{tpu_custom_call.1} parent=27 // pred_fallthru
          _
        // Predicated region
        $region33: #{tpu_custom_call.1} parent=27 // pred_check
          %p169 = pneg %p76
        $region34: #{tpu_custom_call.1} parent=27 // pred_check_branch
          %171 = sbr.rel (%p169) target = $region36
        $region35: #{tpu_custom_call.1} parent=27 // pred_region
          %172 = dma.done [#allocation6], 64
        $region36: #{tpu_custom_call.1} parent=27 // pred_fallthru
          _
        %s173 = sand.u32 %s42, 1
        %s174 = scalar_lea.sflag [#allocation3], %s173
        %s175 = sand.u32 %s42, 1
        %s176 = smul.addr %s175, 4
        %s177 = scalar_lea.vmem [#allocation2], %s176
        %p178 = pneg %p55
        %p179 = pneg %p52
        %p180 = pneg %p76
        %p181 = pneg %p73
        %p182 = pneg %p104
        %p183 = pneg %p101
        %s184 = sand.u32 %s91, 1
        %s185 = scalar_lea.sflag [#allocation4], %s184
        %s186 = sand.u32 %s91, 1
        %s187 = smul.addr %s186, 8
        %s188 = scalar_lea.vmem [#allocation7], %s187
        %v189 = vld [vmem:[%s164] sm:$0xf]
        %v190 = vld [vmem:[#allocation5] ss:$2 sm:$0x3]
        %s191 = scalar_lea.vmem [#allocation5], 1
        %v192 = vld [vmem:[%s191] ss:$2 sm:$0x3]
        %194 = vrot.lane.b32.xlu0 %v189, 16
        %v195 = vpop.permute.xlu0 %194
        %vm197 = vcmask 130048
        %v198 = vsel %vm197, %v189, %v195
        %200 = vrot.lane.b32.xlu0 %v198, 32
        %v201 = vpop.permute.xlu0 %200
        %vm203 = vcmask 261120
        %v204 = vsel %vm203, %v198, %v201
        %206 = vrot.lane.b32.xlu0 %v204, 64
        %v207 = vpop.permute.xlu0 %206
        %vm209 = vcmask 523264
        %v210 = vsel %vm209, %v204, %v207
        %v212 = vcombine.low %v210, %v210
        %214 = vst [vmem:[%s188] sm:$0xff] %v212
        %v215 = vld [vmem:[%s188] sm:$0xff]
        %v217 = vcombine.high %v215, %v215
        %218 = vrot.lane.b32.xlu0 %v215, 1
        %v219 = vpop.permute.xlu0 %218
        %220 = vrot.lane.b32.xlu0 %v217, 1
        %v221 = vpop.permute.xlu0 %220
        %vm222 = vcmask 7168
        %v223 = vsel %vm222, %v219, %v221
        %v226 = vsel %vm222, -inf, %v219
        %vm227 = vcmp.ge.s32.totalorder %v190, 1
        %v228 = vsel %vm227, 1, 0
        %v229 = vlaneseq
        %v230 = vshrl.u32 %v229, 7
        %v231 = vsub.s32 0, %v230
        %v232 = vrot.slane %v228, %v231
        %v233 = vlaneseq
        %v234 = vshrl.u32 %v233, 7
        %v235 = vsub.s32 1, %v234
        %v236 = vrot.slane %v228, %v235
        %vm237 = vcmp.eq.s32.totalorder %v232, 1
        %vm238 = vcmp.eq.s32.totalorder %v236, 1
        %v239 = vsel %vm237, %v226, -inf
        %v240 = vsel %vm238, %v223, -inf
        %v243 = vcombine.low %v239, %v240
        %v245 = vmax.f32 %v215, %v243
        %246 = vst [vmem:[%s188] sm:$0xff] %v245
        %v247 = vld [vmem:[%s188] sm:$0xff]
        %v249 = vcombine.high %v247, %v247
        %250 = vrot.lane.b32.xlu0 %v247, 2
        %v251 = vpop.permute.xlu0 %250
        %252 = vrot.lane.b32.xlu0 %v249, 2
        %v253 = vpop.permute.xlu0 %252
        %vm254 = vcmask 15360
        %v255 = vsel %vm254, %v251, %v253
        %v258 = vsel %vm254, -inf, %v251
        %vm259 = vcmp.ge.s32.totalorder %v190, 2
        %v260 = vsel %vm259, 1, 0
        %v261 = vlaneseq
        %v262 = vshrl.u32 %v261, 7
        %v263 = vsub.s32 0, %v262
        %v264 = vrot.slane %v260, %v263
        %v265 = vlaneseq
        %v266 = vshrl.u32 %v265, 7
        %v267 = vsub.s32 1, %v266
        %v268 = vrot.slane %v260, %v267
        %vm269 = vcmp.eq.s32.totalorder %v264, 1
        %vm270 = vcmp.eq.s32.totalorder %v268, 1
        %v271 = vsel %vm269, %v258, -inf
        %v272 = vsel %vm270, %v255, -inf
        %v275 = vcombine.low %v271, %v272
        %v277 = vmax.f32 %v247, %v275
        %278 = vst [vmem:[%s188] sm:$0xff] %v277
        %v279 = vld [vmem:[%s188] sm:$0xff]
        %v281 = vcombine.high %v279, %v279
        %282 = vrot.lane.b32.xlu0 %v279, 4
        %v283 = vpop.permute.xlu0 %282
        %284 = vrot.lane.b32.xlu0 %v281, 4
        %v285 = vpop.permute.xlu0 %284
        %vm286 = vcmask 31744
        %v287 = vsel %vm286, %v283, %v285
        %v290 = vsel %vm286, -inf, %v283
        %vm291 = vcmp.ge.s32.totalorder %v190, 4
        %v292 = vsel %vm291, 1, 0
        %v293 = vlaneseq
        %v294 = vshrl.u32 %v293, 7
        %v295 = vsub.s32 0, %v294
        %v296 = vrot.slane %v292, %v295
        %v297 = vlaneseq
        %v298 = vshrl.u32 %v297, 7
        %v299 = vsub.s32 1, %v298
        %v300 = vrot.slane %v292, %v299
        %vm301 = vcmp.eq.s32.totalorder %v296, 1
        %vm302 = vcmp.eq.s32.totalorder %v300, 1
        %v303 = vsel %vm301, %v290, -inf
        %v304 = vsel %vm302, %v287, -inf
        %v307 = vcombine.low %v303, %v304
        %v309 = vmax.f32 %v279, %v307
        %310 = vst [vmem:[%s188] sm:$0xff] %v309
        %v311 = vld [vmem:[%s188] sm:$0xff]
        %v313 = vcombine.high %v311, %v311
        %314 = vrot.lane.b32.xlu0 %v311, 8
        %v315 = vpop.permute.xlu0 %314
        %316 = vrot.lane.b32.xlu0 %v313, 8
        %v317 = vpop.permute.xlu0 %316
        %vm318 = vcmask 64512
        %v319 = vsel %vm318, %v315, %v317
        %v322 = vsel %vm318, -inf, %v315
        %vm323 = vcmp.ge.s32.totalorder %v190, 8
        %v324 = vsel %vm323, 1, 0
        %v325 = vlaneseq
        %v326 = vshrl.u32 %v325, 7
        %v327 = vsub.s32 0, %v326
        %v328 = vrot.slane %v324, %v327
        %v329 = vlaneseq
        %v330 = vshrl.u32 %v329, 7
        %v331 = vsub.s32 1, %v330
        %v332 = vrot.slane %v324, %v331
        %vm333 = vcmp.eq.s32.totalorder %v328, 1
        %vm334 = vcmp.eq.s32.totalorder %v332, 1
        %v335 = vsel %vm333, %v322, -inf
        %v336 = vsel %vm334, %v319, -inf
        %v339 = vcombine.low %v335, %v336
        %v341 = vmax.f32 %v311, %v339
        %342 = vst [vmem:[%s188] sm:$0xff] %v341
        %vm343 = vcmp.ne.s32.totalorder %v192, 0
        %v344 = vld [vmem:[%s188] sm:$0xff]
        %v345 = vsel %vm343, 1, 0
        %v346 = vlaneseq
        %v347 = vshrl.u32 %v346, 7
        %v348 = vsub.s32 0, %v347
        %v349 = vrot.slane %v345, %v348
        %v350 = vlaneseq
        %v351 = vshrl.u32 %v350, 7
        %v352 = vsub.s32 1, %v351
        %v353 = vrot.slane %v345, %v352
        %vm354 = vcmp.eq.s32.totalorder %v349, 1
        %vm355 = vcmp.eq.s32.totalorder %v353, 1
        %v357 = vcombine.high %v344, %v344
        %v359 = vsel %vm354, %v344, 0.0
        %v360 = vsel %vm355, %v357, 0.0
        %v363 = vcombine.low %v359, %v360
        %365 = vst [vmem:[%s188] sm:$0xff] %v363
        %s366 = sand.u32 %s91, 1
        %s367 = scalar_lea.sflag [#allocation4], %s366
        %s368 = sand.u32 %s91, 1
        %s369 = smul.addr %s368, 8
        %s370 = scalar_lea.vmem [#allocation7], %s369
        // Predicated region
        $region37: #{tpu_custom_call.1} parent=27 // pred_check
          %p371 = pneg %p101
        $region38: #{tpu_custom_call.1} parent=27 // pred_check_branch
          %373 = sbr.rel (%p371) target = $region40
        $region39: #{tpu_custom_call.1} parent=27 // pred_region
          %s375 = ssub.s32 128, 128
          %376 = vsyncadd %s367, %s375
          %s377 = smul.addr %s25, 2
          %s378 = smul.addr %s24, 2
          %s379 = sadd.s32 %s377, %s378
          %s380 = smul.addr %s379, 64
          %s381 = scalar_lea.hbm %s2, %s380
          %s383 = sshll.u32 %s370, 4
          %s384 = int_to_ptr.vmem [resolvable:$true] %s383
          %386 = dma.vmem_to_hbm [thread:$0]  %s384, 128, %s381, %s367
        $region40: #{tpu_custom_call.1} parent=27 // pred_fallthru
          _
      $region28: #{tpu_custom_call.1} parent=5 // pred_fallthru
        _
      %p387 = scmp.le.s32.totalorder 2, %s15
      // Predicated region
      $region41: #{tpu_custom_call.1} parent=5 // pred_check
        %p388 = pneg %p387
      $region42: #{tpu_custom_call.1} parent=5 // pred_check_branch
        %390 = sbr.rel (%p388) target = $region44
      $region43: #{tpu_custom_call.1} parent=5 // pred_region
        %s391 = ssub.s32 %s15, 2
        // Predicated region
        $region45: #{tpu_custom_call.1} parent=43 // pred_check
          %p392 = pneg %p107
        $region46: #{tpu_custom_call.1} parent=43 // pred_check_branch
          %394 = sbr.rel (%p392) target = $region48
        $region47: #{tpu_custom_call.1} parent=43 // pred_region
          %s395 = sand.u32 %s92, 1
          %s396 = scalar_lea.sflag [#allocation4], %s395
          %s397 = sand.u32 %s92, 1
          %s398 = smul.addr %s397, 8
          %s399 = scalar_lea.vmem [#allocation7], %s398
          %400 = dma.done %s396, 128
        $region48: #{tpu_custom_call.1} parent=43 // pred_fallthru
          _
      $region44: #{tpu_custom_call.1} parent=5 // pred_fallthru
        _
    $region6: #{tpu_custom_call.1} parent=1 // loop_footer
      %s19 = sadd.s32 1, %s15
    $region7: #{tpu_custom_call.1} parent=1 // loop_footer_branch
      %14 = sbr.rel target = $region3
    $region8: #{tpu_custom_call.1} parent=1 // loop_exit
      _
    %401 = vsyncpa [#allocation3], 1
    %s402 = scalar_lea.sflag [#allocation3], 1
    %403 = vsyncpa %s402, 1
    %404 = vsyncpa [#allocation6], 1
    %405 = vsyncpa [#allocation4], 1
    %s406 = scalar_lea.sflag [#allocation4], 1
    %407 = vsyncpa %s406, 1

</llo_original>
